<compile_context>
chip_gen: v7x
topology: tpu7x:2x2x1
jax: 0.10.0
libtpu: 0.0.40
codegen_flags: <defaults>
</compile_context>

<pallas_src>
import math

import jax
import jax.numpy as jnp
from jax.experimental import pallas as pl
from jax.experimental.pallas import tpu as pltpu


# ----------------------------------------------------------------------------
# Kernel 1: bilinear x2 upsample (align_corners=True) as two small matmuls.
# ----------------------------------------------------------------------------
def _bilinear_up_kernel(x_ref, ah_ref, awt_ref, o_ref):
    # x_ref: (1, 1, h, w)  ah_ref: (2h, h)  awt_ref: (w, 2w)  o_ref: (1, 1, 2h, 2w)
    x = x_ref[0, 0].astype(jnp.float32)
    t = jnp.dot(x, awt_ref[...], preferred_element_type=jnp.float32)    # (h, 2w)
    up = jnp.dot(ah_ref[...], t, preferred_element_type=jnp.float32)    # (2h, 2w)
    o_ref[0, 0] = up.astype(o_ref.dtype)


def _interp_matrix(out_size, in_size):
    """Row-stochastic 1-D bilinear interpolation matrix, align_corners=True."""
    if in_size == 1:
        return jnp.ones((out_size, 1), jnp.float32)
    pos = jnp.arange(out_size, dtype=jnp.float32) * ((in_size - 1) / (out_size - 1))
    lo_f = jnp.clip(jnp.floor(pos), 0.0, in_size - 2)
    frac = pos - lo_f
    lo = lo_f.astype(jnp.int32)
    low = jax.nn.one_hot(lo, in_size, dtype=jnp.float32) * (1.0 - frac)[:, None]
    high = jax.nn.one_hot(lo + 1, in_size, dtype=jnp.float32) * frac[:, None]
    return low + high


def bilinear_upsample_2x(x):
    """nn.Upsample(scale_factor=2, mode='bilinear', align_corners=True), NCHW."""
    n, c, h, w = x.shape
    big_h, big_w = 2 * h, 2 * w
    a_h = _interp_matrix(big_h, h)          # (2h, h)
    a_wt = _interp_matrix(big_w, w).T       # (w, 2w)
    return pl.pallas_call(
        _bilinear_up_kernel,
        out_shape=jax.ShapeDtypeStruct((n, c, big_h, big_w), x.dtype),
        grid=(n, c),
        in_specs=[
            pl.BlockSpec((1, 1, h, w), lambda i, j: (i, j, 0, 0)),
            pl.BlockSpec((big_h, h), lambda i, j: (0, 0)),
            pl.BlockSpec((w, big_w), lambda i, j: (0, 0)),
        ],
        out_specs=pl.BlockSpec((1, 1, big_h, big_w), lambda i, j: (i, j, 0, 0)),
        compiler_params=pltpu.CompilerParams(
            dimension_semantics=("parallel", "parallel")),
    )(x, a_h, a_wt)


# ----------------------------------------------------------------------------
# Kernel 2: 3x3 conv (padding=1) + bias + ReLU, NCHW, tiny channel counts.
# ----------------------------------------------------------------------------
def _conv3x3_relu_kernel(x_ref, w_ref, b_ref, o_ref):
    # x_ref: (1, Cin, H+2, W+2) VMEM   w_ref: (9*Cout*Cin,) SMEM (layout [ky,kx,co,ci])
    # b_ref: (Cout,) SMEM              o_ref: (1, Cout, H, W) VMEM
    _, cin, _, _ = x_ref.shape
    _, cout, h, w = o_ref.shape
    # Per-output-channel accumulators seeded with the bias (hoisted; done once per tile).
    acc = [jnp.full((h, w), b_ref[co], jnp.float32) for co in range(cout)]
    for ci in range(cin):
        xc = x_ref[0, ci].astype(jnp.float32)                 # (H+2, W+2)
        # The 9 shifted windows for this input channel (static slices).
        wins = [xc[ky:ky + h, kx:kx + w] for ky in range(3) for kx in range(3)]
        for co in range(cout):
            for k in range(9):
                wv = w_ref[k * cout * cin + co * cin + ci]    # scalar from SMEM
                acc[co] = acc[co] + wv * wins[k]
    for co in range(cout):
        o_ref[0, co] = jnp.maximum(acc[co], 0.0).astype(o_ref.dtype)


def conv3x3_relu(x, weight, bias):
    """Conv2d(k=3, padding=1, stride=1) + bias + ReLU on NCHW via a Pallas kernel."""
    n, cin, h, w = x.shape
    cout = weight.shape[0]
    x_pad = jnp.pad(x, ((0, 0), (0, 0), (1, 1), (1, 1)))       # conv padding=1
    # Weight -> SMEM scalar table, layout [ky, kx, co, ci] flattened.
    w_flat = jnp.transpose(weight, (2, 3, 0, 1)).reshape(-1)
    return pl.pallas_call(
        _conv3x3_relu_kernel,
        out_shape=jax.ShapeDtypeStruct((n, cout, h, w), x.dtype),
        grid=(n,),
        in_specs=[
            pl.BlockSpec((1, cin, h + 2, w + 2), lambda i: (i, 0, 0, 0)),
            pl.BlockSpec(memory_space=pltpu.MemorySpace.SMEM),
            pl.BlockSpec(memory_space=pltpu.MemorySpace.SMEM),
        ],
        out_specs=pl.BlockSpec((1, cout, h, w), lambda i: (i, 0, 0, 0)),
        compiler_params=pltpu.CompilerParams(dimension_semantics=("parallel",)),
    )(x_pad, w_flat, bias)


# ----------------------------------------------------------------------------
# Up.forward
# ----------------------------------------------------------------------------
def up_forward(x1, x2, params):
    """Up(in_channels, out_channels, bilinear=True).forward(x1, x2)."""
    x1u = bilinear_upsample_2x(x1)
    # Pad x1 to x2's spatial size (F.pad with trunc-div split).
    dy = x2.shape[2] - x1u.shape[2]
    dx = x2.shape[3] - x1u.shape[3]
    x1u = jnp.pad(x1u, ((0, 0), (0, 0),
                        (dy // 2, dy - dy // 2),
                        (dx // 2, dx - dx // 2)))
    x = jnp.concatenate([x2, x1u], axis=1)                     # channel concat (JAX glue)
    # DoubleConv: conv+ReLU (+SNorm identity) twice.
    x = conv3x3_relu(x, params["w1"], params["b1"])
    # TODO(synk): SNorm(out_channels) undefined in the spec -> identity.
    x = conv3x3_relu(x, params["w2"], params["b2"])
    # TODO(synk): SNorm(out_channels) undefined in the spec -> identity.
    return x


# ----------------------------------------------------------------------------
# Params + pure-JAX reference
# ----------------------------------------------------------------------------
def init_up_params(key, in_channels, out_channels, dtype=jnp.float32):
    """Matches DoubleConv.__init__: kaiming_normal_ conv weights, default conv bias."""
    k1, k2, k3, k4 = jax.random.split(key, 4)

    def conv_init(kw, kb, cin, cout):
        fan_in = cin * 3 * 3
        std = math.sqrt(2.0 / fan_in)
        wgt = std * jax.random.normal(kw, (cout, cin, 3, 3), dtype)
        bound = 1.0 / math.sqrt(fan_in)
        b = jax.random.uniform(kb, (cout,), dtype, -bound, bound)
        return wgt, b

    w1, b1 = conv_init(k1, k2, in_channels, out_channels)
    w2, b2 = conv_init(k3, k4, out_channels, out_channels)
    return {"w1": w1, "b1": b1, "w2": w2, "b2": b2}


def up_forward_reference(x1, x2, params):
    n, c, h, w = x1.shape
    a_h = _interp_matrix(2 * h, h)
    a_w = _interp_matrix(2 * w, w)
    x1u = jnp.einsum("ab,ncbd,ed->ncae", a_h, x1, a_w)
    dy = x2.shape[2] - x1u.shape[2]
    dx = x2.shape[3] - x1u.shape[3]
    x1u = jnp.pad(x1u, ((0, 0), (0, 0),
                        (dy // 2, dy - dy // 2),
                        (dx // 2, dx - dx // 2)))
    x = jnp.concatenate([x2, x1u], axis=1)

    def conv(xx, wgt, b):
        y = jax.lax.conv_general_dilated(
            xx, wgt, window_strides=(1, 1), padding=((1, 1), (1, 1)),
            dimension_numbers=("NCHW", "OIHW", "NCHW"))
        return jnp.maximum(y + b[None, :, None, None], 0.0)

    x = conv(x, params["w1"], params["b1"])
    x = conv(x, params["w2"], params["b2"])
    return x


if __name__ == "__main__":
    key = jax.random.PRNGKey(0)
    k1, k2, kp = jax.random.split(key, 3)

    N = 2
    in_channels, out_channels = 8, 4
    # x1 comes from the deeper level (half spatial, in_channels//2 ch),
    # x2 is the skip connection (full spatial, in_channels//2 ch).
    x1 = jax.random.normal(k1, (N, in_channels // 2, 8, 8), jnp.float32)
    x2 = jax.random.normal(k2, (N, in_channels // 2, 16, 16), jnp.float32)
    params = init_up_params(kp, in_channels, out_channels)

    y = up_forward(x1, x2, params)
    y = jax.block_until_ready(y)

    y_ref = up_forward_reference(x1, x2, params)
    assert y.shape == (N, out_channels, 16, 16)
    assert jnp.allclose(y, y_ref, atol=1e-4, rtol=1e-4), float(jnp.max(jnp.abs(y - y_ref)))

    print("KERNEL_OK")
</pallas_src>

<mosaic_0001>
module attributes {stable_mosaic.version = 11 : i64} {
  func.func @_bilinear_up_kernel(%arg0: i32, %arg1: i32, %arg2: memref<1x1x8x8xf32, #tpu.memory_space<vmem>>, %arg3: memref<16x8xf32, #tpu.memory_space<vmem>>, %arg4: memref<8x16xf32, #tpu.memory_space<vmem>>, %arg5: memref<1x1x16x16xf32, #tpu.memory_space<vmem>>) attributes {dimension_semantics = [#tpu.dimension_semantics<parallel>, #tpu.dimension_semantics<parallel>], iteration_bounds = array<i64: 2, 4>, scalar_prefetch = 0 : i64, scratch_operands = 0 : i64, tpu.core_type = #tpu.core_type<tc>, window_params = [{transform_indices = @transform_0, window_bounds = array<i64: 1, 1, 8, 8>}, {pipeline_mode = #tpu.pipeline_mode<synchronous>, transform_indices = @transform_1, window_bounds = array<i64: 16, 8>}, {pipeline_mode = #tpu.pipeline_mode<synchronous>, transform_indices = @transform_2, window_bounds = array<i64: 8, 16>}, {transform_indices = @transform_3, window_bounds = array<i64: 1, 1, 16, 16>}]} {
    %c0 = arith.constant 0 : index
    %c0_0 = arith.constant 0 : index
    %c0_1 = arith.constant 0 : index
    %c0_2 = arith.constant 0 : index
    %0 = vector.load %arg2[%c0, %c0_0, %c0_1, %c0_2] : memref<1x1x8x8xf32, #tpu.memory_space<vmem>>, vector<1x1x8x8xf32>
    %1 = vector.shape_cast %0 : vector<1x1x8x8xf32> to vector<8x8xf32>
    %c0_3 = arith.constant 0 : index
    %c0_4 = arith.constant 0 : index
    %2 = vector.load %arg4[%c0_3, %c0_4] : memref<8x16xf32, #tpu.memory_space<vmem>>, vector<8x16xf32>
    %cst = arith.constant dense<0.000000e+00> : vector<8x16xf32>
    %3 = tpu.matmul %1, %2, %cst {dimension_numbers = #tpu.dot_dimension_numbers<[1], [0], [0], [1], [0, 0, 1, 1], [], []>} : vector<8x8xf32>, vector<8x16xf32>, vector<8x16xf32> -> vector<8x16xf32>
    %c0_5 = arith.constant 0 : index
    %c0_6 = arith.constant 0 : index
    %4 = vector.load %arg3[%c0_5, %c0_6] : memref<16x8xf32, #tpu.memory_space<vmem>>, vector<16x8xf32>
    %cst_7 = arith.constant dense<0.000000e+00> : vector<16x16xf32>
    %5 = tpu.matmul %4, %3, %cst_7 {dimension_numbers = #tpu.dot_dimension_numbers<[1], [0], [0], [1], [0, 0, 1, 1], [], []>} : vector<16x8xf32>, vector<8x16xf32>, vector<16x16xf32> -> vector<16x16xf32>
    %c0_8 = arith.constant 0 : index
    %c0_9 = arith.constant 0 : index
    %c0_10 = arith.constant 0 : index
    %c0_11 = arith.constant 0 : index
    %6 = vector.load %arg5[%c0_8, %c0_9, %c0_10, %c0_11] : memref<1x1x16x16xf32, #tpu.memory_space<vmem>>, vector<1x1x16x16xf32>
    %7 = vector.shape_cast %6 : vector<1x1x16x16xf32> to vector<16x16xf32>
    %8 = vector.shape_cast %5 : vector<16x16xf32> to vector<1x1x16x16xf32>
    tpu.vector_store %arg5[%c0_8, %c0_9, %c0_10, %c0_11], %8 {strides = array<i32>} : memref<1x1x16x16xf32, #tpu.memory_space<vmem>>, vector<1x1x16x16xf32>,
    return
  }
  func.func @transform_0(%arg0: i32, %arg1: i32) -> (i32, i32, i32, i32) {
    %c0_i32 = arith.constant 0 : i32
    %c0_i32_0 = arith.constant 0 : i32
    %c0_i32_1 = arith.constant 0 : i32
    return %arg0, %arg1, %c0_i32, %c0_i32_0 : i32, i32, i32, i32
  }
  func.func @transform_1(%arg0: i32, %arg1: i32) -> (i32, i32) {
    %c0_i32 = arith.constant 0 : i32
    %c0_i32_0 = arith.constant 0 : i32
    %c0_i32_1 = arith.constant 0 : i32
    return %c0_i32, %c0_i32_0 : i32, i32
  }
  func.func @transform_2(%arg0: i32, %arg1: i32) -> (i32, i32) {
    %c0_i32 = arith.constant 0 : i32
    %c0_i32_0 = arith.constant 0 : i32
    %c0_i32_1 = arith.constant 0 : i32
    return %c0_i32, %c0_i32_0 : i32, i32
  }
  func.func @transform_3(%arg0: i32, %arg1: i32) -> (i32, i32, i32, i32) {
    %c0_i32 = arith.constant 0 : i32
    %c0_i32_0 = arith.constant 0 : i32
    %c0_i32_1 = arith.constant 0 : i32
    return %arg0, %arg1, %c0_i32, %c0_i32_0 : i32, i32, i32, i32
  }
}

</mosaic_0001>

<llo_original>
// kernel: tpu_custom_call.1
$region0: #{tpu_custom_call.1}
  #allocation0 [shape = 'u32[]', space=smem, size = 0x4, offset = 0x4, fixed_abs, tag = 'smem constant byte address 0x4 - core index']
  #allocation1 [shape = 'u32[144,128]{1,0:T(1,128)}', space=vmem, size = 0x12000, scoped, tag = 'internal scratch']
  %s0 = inlined_call_operand.hbm [shape: f32[2,4,8,8], index: 0, kind: input, shape index: {}]
  %s1 = inlined_call_operand.vmem [shape: f32[16,8], index: 1, kind: input, shape index: {}]
  %s2 = inlined_call_operand.vmem [shape: f32[8,16], index: 2, kind: input, shape index: {}]
  %s3 = inlined_call_operand.hbm [shape: f32[2,4,16,16], index: 3, kind: output, shape index: {}]
  %s4 = sld [smem:[#allocation0]]
  $region49: #{tpu_custom_call.1} parent=0
    _
  %s6 = ssub.s32 1, %s4
  %s7 = scalar_select 0, %s6, %s4
  $region1: #{tpu_custom_call.1} parent=0
    #allocation2 [shape = 'u8[8192]{0}', space=vmem, size = 0x2000, scoped, tag = 'input window, operand 0']
    #allocation3 [shape = 's32[2]{0}', space=sflag, size = 0x8, scoped, tag = 'scoped memory for tpu_custom_call.1']
    #allocation4 [shape = 's32[2]{0}', space=sflag, size = 0x8, scoped, tag = 'scoped memory for tpu_custom_call.1']
    #allocation5 [shape = 'u8[16384]{0}', space=vmem, size = 0x4000, scoped, tag = 'output window, operand 0']
    %8 = vsyncpa [#allocation3], 0
    %s9 = scalar_lea.sflag [#allocation3], 1
    %10 = vsyncpa %s9, 0
    %11 = vsyncpa [#allocation4], 0
    %s12 = scalar_lea.sflag [#allocation4], 1
    %13 = vsyncpa %s12, 0
    loop: start=0, step=1, limit=10
    $region2: #{tpu_custom_call.1} parent=1 // loop_pre_header
      _
    $region3: #{tpu_custom_call.1} parent=1 // loop_header
      %s15 = sphi 0, %s19
      %p16 = scmp.ge.s32.totalorder %s15, 10
      %s22 = sphi 0, %s34
      %s23 = sphi 0, %s30
      %s24 = sphi 0, %s22
      %s25 = sphi 0, %s23
      %s26 = sphi 0, %s24
      %s27 = sphi 0, %s25
      %s39 = sphi 0, %s41
      %s42 = sphi 0, %s39
      %s43 = sphi 0, %s42
      %s59 = sphi 0, %s43
      %s63 = sphi 0, %s63
      %s65 = sphi 0, %s63
      %s66 = sphi 0, %s65
      %s80 = sphi 0, %s66
      %s84 = sphi 0, %s84
      %s86 = sphi 0, %s84
      %s87 = sphi 0, %s86
      %s101 = sphi 0, %s87
      %s109 = sphi 0, %s111
      %s112 = sphi 0, %s109
      %s113 = sphi 0, %s112
      %s129 = sphi 0, %s113
    $region4: #{tpu_custom_call.1} parent=1 // loop_header_branch
      %18 = sbr.rel (%p16) target = $region8
    $region5: #{tpu_custom_call.1} parent=1 // loop_body
      %s20 = ssub.s32 %s15, 1
      %s21 = ssub.s32 %s15, 2
      %s28 = sadd.s32 1, %s23
      %p29 = scmp.ge.s32.totalorder %s28, 4
      %s30 = scalar_select %p29, 0, %s28
      %s31 = sadd.s32 1, %s22
      %s32 = scalar_select %p29, %s31, %s22
      %p33 = scmp.ge.s32.totalorder %s32, 2
      %s34 = scalar_select %p33, 0, %s32
      %s35 = ssub.s32 %s22, %s34
      %s36 = ssub.s32 %s23, %s30
      %s37 = sor.u32 %s35, %s36
      %p38 = scmp.eq.s32.totalorder %s37, 0
      %s40 = sadd.s32 %s39, 1
      %s41 = scalar_select %p38, %s39, %s40
      %p44 = pneg %p38
      %p45 = scmp.eq.s32.totalorder %s15, 7
      %p46 = por %p44, %p45
      %p47 = scmp.ne.s32.totalorder %s39, %s42
      %p48 = scmp.eq.s32.totalorder %s15, 0
      %p49 = por %p47, %p48
      %p50 = scmp.ne.s32.totalorder %s39, %s42
      %p51 = scmp.eq.s32.totalorder %s20, 7
      %p52 = por %p50, %p51
      %p53 = scmp.ne.s32.totalorder %s42, %s43
      %p54 = scmp.eq.s32.totalorder %s20, 0
      %p55 = por %p53, %p54
      %p56 = scmp.ne.s32.totalorder %s42, %s43
      %p57 = scmp.eq.s32.totalorder %s21, 7
      %p58 = por %p56, %p57
      %p60 = scmp.ne.s32.totalorder %s43, %s59
      %p61 = scmp.eq.s32.totalorder %s21, 0
      %p62 = por %p60, %p61
      %s64 = sadd.s32 %s63, 1
      %p67 = scmp.eq.s32.totalorder %s15, 7
      %p68 = scmp.ne.s32.totalorder %s63, %s65
      %p69 = scmp.eq.s32.totalorder %s15, 0
      %p70 = por %p68, %p69
      %p71 = scmp.ne.s32.totalorder %s63, %s65
      %p72 = scmp.eq.s32.totalorder %s20, 7
      %p73 = por %p71, %p72
      %p74 = scmp.ne.s32.totalorder %s65, %s66
      %p75 = scmp.eq.s32.totalorder %s20, 0
      %p76 = por %p74, %p75
      %p77 = scmp.ne.s32.totalorder %s65, %s66
      %p78 = scmp.eq.s32.totalorder %s21, 7
      %p79 = por %p77, %p78
      %p81 = scmp.ne.s32.totalorder %s66, %s80
      %p82 = scmp.eq.s32.totalorder %s21, 0
      %p83 = por %p81, %p82
      %s85 = sadd.s32 %s84, 1
      %p88 = scmp.eq.s32.totalorder %s15, 7
      %p89 = scmp.ne.s32.totalorder %s84, %s86
      %p90 = scmp.eq.s32.totalorder %s15, 0
      %p91 = por %p89, %p90
      %p92 = scmp.ne.s32.totalorder %s84, %s86
      %p93 = scmp.eq.s32.totalorder %s20, 7
      %p94 = por %p92, %p93
      %p95 = scmp.ne.s32.totalorder %s86, %s87
      %p96 = scmp.eq.s32.totalorder %s20, 0
      %p97 = por %p95, %p96
      %p98 = scmp.ne.s32.totalorder %s86, %s87
      %p99 = scmp.eq.s32.totalorder %s21, 7
      %p100 = por %p98, %p99
      %p102 = scmp.ne.s32.totalorder %s87, %s101
      %p103 = scmp.eq.s32.totalorder %s21, 0
      %p104 = por %p102, %p103
      %s105 = ssub.s32 %s22, %s34
      %s106 = ssub.s32 %s23, %s30
      %s107 = sor.u32 %s105, %s106
      %p108 = scmp.eq.s32.totalorder %s107, 0
      %s110 = sadd.s32 %s109, 1
      %s111 = scalar_select %p108, %s109, %s110
      %p114 = pneg %p108
      %p115 = scmp.eq.s32.totalorder %s15, 7
      %p116 = por %p114, %p115
      %p117 = scmp.ne.s32.totalorder %s109, %s112
      %p118 = scmp.eq.s32.totalorder %s15, 0
      %p119 = por %p117, %p118
      %p120 = scmp.ne.s32.totalorder %s109, %s112
      %p121 = scmp.eq.s32.totalorder %s20, 7
      %p122 = por %p120, %p121
      %p123 = scmp.ne.s32.totalorder %s112, %s113
      %p124 = scmp.eq.s32.totalorder %s20, 0
      %p125 = por %p123, %p124
      %p126 = scmp.ne.s32.totalorder %s112, %s113
      %p127 = scmp.eq.s32.totalorder %s21, 7
      %p128 = por %p126, %p127
      %p130 = scmp.ne.s32.totalorder %s113, %s129
      %p131 = scmp.eq.s32.totalorder %s21, 0
      %p132 = por %p130, %p131
      %p133 = scmp.le.s32.totalorder 1, %s15
      %p134 = scmp.lt.s32.totalorder %s15, 9
      %p135 = pnand %p133, %p134
      %p136 = pneg %p135
      // Predicated region
      $region9: #{tpu_custom_call.1} parent=5 // pred_check
        _
      $region10: #{tpu_custom_call.1} parent=5 // pred_check_branch
        %138 = sbr.rel (%p135) target = $region12
      $region11: #{tpu_custom_call.1} parent=5 // pred_region
        %s139 = ssub.s32 %s15, 1
        // Predicated region
        $region13: #{tpu_custom_call.1} parent=11 // pred_check
          %p140 = pneg %p76
        $region14: #{tpu_custom_call.1} parent=11 // pred_check_branch
          %142 = sbr.rel (%p140) target = $region16
        $region15: #{tpu_custom_call.1} parent=11 // pred_region
          _
        $region16: #{tpu_custom_call.1} parent=11 // pred_fallthru
          _
        // Predicated region
        $region17: #{tpu_custom_call.1} parent=11 // pred_check
          %p143 = pneg %p97
        $region18: #{tpu_custom_call.1} parent=11 // pred_check_branch
          %145 = sbr.rel (%p143) target = $region20
        $region19: #{tpu_custom_call.1} parent=11 // pred_region
          _
        $region20: #{tpu_custom_call.1} parent=11 // pred_fallthru
          _
      $region12: #{tpu_custom_call.1} parent=5 // pred_fallthru
        _
      %p146 = scmp.lt.s32.totalorder %s15, 8
      // Predicated region
      $region21: #{tpu_custom_call.1} parent=5 // pred_check
        %p147 = pneg %p146
      $region22: #{tpu_custom_call.1} parent=5 // pred_check_branch
        %149 = sbr.rel (%p147) target = $region24
      $region23: #{tpu_custom_call.1} parent=5 // pred_region
        // Predicated region
        $region25: #{tpu_custom_call.1} parent=23 // pred_check
          %p150 = pneg %p49
        $region26: #{tpu_custom_call.1} parent=23 // pred_check_branch
          %152 = sbr.rel (%p150) target = $region28
        $region27: #{tpu_custom_call.1} parent=23 // pred_region
          %s153 = sand.u32 %s39, 1
          %s154 = scalar_lea.sflag [#allocation3], %s153
          %s155 = sand.u32 %s39, 1
          %s156 = smul.addr %s155, 8
          %s157 = scalar_lea.vmem [#allocation2], %s156
          %s159 = ssub.s32 128, 128
          %160 = vsyncadd %s154, %s159
          %s161 = smul.addr %s22, 4
          %s162 = sadd.s32 %s23, %s161
          %s163 = smul.addr %s162, 128
          %s164 = scalar_lea.hbm %s0, %s163
          %s166 = sshll.u32 %s157, 4
          %s167 = int_to_ptr.vmem [resolvable:$true] %s166
          %169 = dma.hbm_to_vmem [thread:$0]  %s164, 128, %s167, %s154
        $region28: #{tpu_custom_call.1} parent=23 // pred_fallthru
          _
      $region24: #{tpu_custom_call.1} parent=5 // pred_fallthru
        _
      %p170 = scmp.le.s32.totalorder 1, %s15
      %p171 = scmp.lt.s32.totalorder %s15, 9
      %p172 = pnand %p170, %p171
      %p173 = pneg %p172
      // Predicated region
      $region29: #{tpu_custom_call.1} parent=5 // pred_check
        _
      $region30: #{tpu_custom_call.1} parent=5 // pred_check_branch
        %175 = sbr.rel (%p172) target = $region32
      $region31: #{tpu_custom_call.1} parent=5 // pred_region
        %s176 = ssub.s32 %s15, 1
        %s177 = sand.u32 %s42, 1
        %s178 = scalar_lea.sflag [#allocation3], %s177
        %s179 = sand.u32 %s42, 1
        %s180 = smul.addr %s179, 8
        %s181 = scalar_lea.vmem [#allocation2], %s180
        // Predicated region
        $region33: #{tpu_custom_call.1} parent=31 // pred_check
          %p182 = pneg %p55
        $region34: #{tpu_custom_call.1} parent=31 // pred_check_branch
          %184 = sbr.rel (%p182) target = $region36
        $region35: #{tpu_custom_call.1} parent=31 // pred_region
          %185 = dma.done %s178, 128
        $region36: #{tpu_custom_call.1} parent=31 // pred_fallthru
          _
        %s186 = sand.u32 %s42, 1
        %s187 = scalar_lea.sflag [#allocation3], %s186
        %s188 = sand.u32 %s42, 1
        %s189 = smul.addr %s188, 8
        %s190 = scalar_lea.vmem [#allocation2], %s189
        %p191 = pneg %p55
        %p192 = pneg %p52
        %p193 = pneg %p76
        %p194 = pneg %p73
        %p195 = pneg %p97
        %p196 = pneg %p94
        %p197 = pneg %p125
        %p198 = pneg %p122
        %s199 = sand.u32 %s112, 1
        %s200 = scalar_lea.sflag [#allocation4], %s199
        %s201 = sand.u32 %s112, 1
        %s202 = smul.addr %s201, 16
        %s203 = scalar_lea.vmem [#allocation5], %s202
        %v204 = vld [vmem:[%s181] sm:$0xff]
        %v205 = vld [vmem:[%s2] sm:$0xff]
        %vm206 = vcmask 64512
        %v208 = vsel %vm206, %v204, 0
        %210 = vmatprep.subr.mxu0 0.0
        %211 = vmatpush1.msra.mxu0 %v205
        %212 = vmatprep.subr.mxu0 0.0
        %213 = vmatpush1.msra.mxu0 0.0
        %214 = vmatprep.subr.mxu0 0.0
        %215 = vmatpush1.msra.mxu0 0.0
        %216 = vmatprep.subr.mxu0 0.0
        %217 = vmatpush1.msra.mxu0 0.0
        %218 = vmatprep.subr.mxu0 0.0
        %219 = vmatpush1.msra.mxu0 0.0
        %220 = vmatprep.subr.mxu0 0.0
        %221 = vmatpush1.msra.mxu0 0.0
        %222 = vmatprep.subr.mxu0 0.0
        %223 = vmatpush1.msra.mxu0 0.0
        %224 = vmatprep.subr.mxu0 0.0
        %225 = vmatpush1.msra.mxu0 0.0
        %226 = vmatprep.subr.mxu0 0.0
        %227 = vmatpush1.msra.mxu0 0.0
        %228 = vmatprep.subr.mxu0 0.0
        %229 = vmatpush1.msra.mxu0 0.0
        %230 = vmatprep.subr.mxu0 0.0
        %231 = vmatpush1.msra.mxu0 0.0
        %232 = vmatprep.subr.mxu0 0.0
        %233 = vmatpush1.msra.mxu0 0.0
        %234 = vmatprep.subr.mxu0 0.0
        %235 = vmatpush1.msra.mxu0 0.0
        %236 = vmatprep.subr.mxu0 0.0
        %237 = vmatpush1.msra.mxu0 0.0
        %238 = vmatprep.subr.mxu0 0.0
        %239 = vmatpush1.msra.mxu0 0.0
        %240 = vmatprep.subr.mxu0 0.0
        %241 = vmatpush1.msra.mxu0 0.0
        %242 = vmatprep.subr.mxu0 0.0
        %243 = vmatpush1.msra.mxu0 0.0
        %244 = vmatprep.subr.mxu0 0.0
        %245 = vmatpush1.msra.mxu0 0.0
        %246 = vmatprep.subr.mxu0 0.0
        %247 = vmatpush1.msra.mxu0 0.0
        %248 = vmatprep.subr.mxu0 0.0
        %249 = vmatpush1.msra.mxu0 0.0
        %250 = vmatprep.subr.mxu0 0.0
        %251 = vmatpush1.msra.mxu0 0.0
        %252 = vmatprep.subr.mxu0 0.0
        %253 = vmatpush1.msra.mxu0 0.0
        %254 = vmatprep.subr.mxu0 0.0
        %255 = vmatpush1.msra.mxu0 0.0
        %256 = vmatprep.subr.mxu0 0.0
        %257 = vmatpush1.msra.mxu0 0.0
        %258 = vmatprep.subr.mxu0 0.0
        %259 = vmatpush1.msra.mxu0 0.0
        %260 = vmatprep.subr.mxu0 0.0
        %261 = vmatpush1.msra.mxu0 0.0
        %262 = vmatprep.subr.mxu0 0.0
        %263 = vmatpush1.msra.mxu0 0.0
        %264 = vmatprep.subr.mxu0 0.0
        %265 = vmatpush1.msra.mxu0 0.0
        %266 = vmatprep.subr.mxu0 0.0
        %267 = vmatpush1.msra.mxu0 0.0
        %268 = vmatprep.subr.mxu0 0.0
        %269 = vmatpush1.msra.mxu0 0.0
        %270 = vmatprep.subr.mxu0 0.0
        %271 = vmatpush1.msra.mxu0 0.0
        %272 = vmatprep.subr.mxu0 0.0
        %273 = vmatpush1.msra.mxu0 0.0
        %274 = vmatprep.mubr.f32.mxu0 0.0
        %275 = vmatmul.mubr.f32.gmra.mrb[0].mxu0 %v208
        %v276 = vpop.f32.mrb[0].mxu0
        %v277 = vadd.f32 0.0, %v276
        %v278 = vpop.f32.mrb[0].mxu0
        %279 = vdwg.mxu0
        %v280 = vld [vmem:[%s1] sm:$0xff]
        %v281 = vld [vmem:[%s1 + $0x8] sm:$0xff]
        %v283 = vsel %vm206, %v280, 0
        %v286 = vsel %vm206, %v281, 0
        %288 = vmatprep.subr.mxu0 0.0
        %289 = vmatpush1.msra.mxu0 %v277
        %290 = vmatprep.subr.mxu0 0.0
        %291 = vmatpush1.msra.mxu0 0.0
        %292 = vmatprep.subr.mxu0 0.0
        %293 = vmatpush1.msra.mxu0 0.0
        %294 = vmatprep.subr.mxu0 0.0
        %295 = vmatpush1.msra.mxu0 0.0
        %296 = vmatprep.subr.mxu0 0.0
        %297 = vmatpush1.msra.mxu0 0.0
        %298 = vmatprep.subr.mxu0 0.0
        %299 = vmatpush1.msra.mxu0 0.0
        %300 = vmatprep.subr.mxu0 0.0
        %301 = vmatpush1.msra.mxu0 0.0
        %302 = vmatprep.subr.mxu0 0.0
        %303 = vmatpush1.msra.mxu0 0.0
        %304 = vmatprep.subr.mxu0 0.0
        %305 = vmatpush1.msra.mxu0 0.0
        %306 = vmatprep.subr.mxu0 0.0
        %307 = vmatpush1.msra.mxu0 0.0
        %308 = vmatprep.subr.mxu0 0.0
        %309 = vmatpush1.msra.mxu0 0.0
        %310 = vmatprep.subr.mxu0 0.0
        %311 = vmatpush1.msra.mxu0 0.0
        %312 = vmatprep.subr.mxu0 0.0
        %313 = vmatpush1.msra.mxu0 0.0
        %314 = vmatprep.subr.mxu0 0.0
        %315 = vmatpush1.msra.mxu0 0.0
        %316 = vmatprep.subr.mxu0 0.0
        %317 = vmatpush1.msra.mxu0 0.0
        %318 = vmatprep.subr.mxu0 0.0
        %319 = vmatpush1.msra.mxu0 0.0
        %320 = vmatprep.subr.mxu0 0.0
        %321 = vmatpush1.msra.mxu0 0.0
        %322 = vmatprep.subr.mxu0 0.0
        %323 = vmatpush1.msra.mxu0 0.0
        %324 = vmatprep.subr.mxu0 0.0
        %325 = vmatpush1.msra.mxu0 0.0
        %326 = vmatprep.subr.mxu0 0.0
        %327 = vmatpush1.msra.mxu0 0.0
        %328 = vmatprep.subr.mxu0 0.0
        %329 = vmatpush1.msra.mxu0 0.0
        %330 = vmatprep.subr.mxu0 0.0
        %331 = vmatpush1.msra.mxu0 0.0
        %332 = vmatprep.subr.mxu0 0.0
        %333 = vmatpush1.msra.mxu0 0.0
        %334 = vmatprep.subr.mxu0 0.0
        %335 = vmatpush1.msra.mxu0 0.0
        %336 = vmatprep.subr.mxu0 0.0
        %337 = vmatpush1.msra.mxu0 0.0
        %338 = vmatprep.subr.mxu0 0.0
        %339 = vmatpush1.msra.mxu0 0.0
        %340 = vmatprep.subr.mxu0 0.0
        %341 = vmatpush1.msra.mxu0 0.0
        %342 = vmatprep.subr.mxu0 0.0
        %343 = vmatpush1.msra.mxu0 0.0
        %344 = vmatprep.subr.mxu0 0.0
        %345 = vmatpush1.msra.mxu0 0.0
        %346 = vmatprep.subr.mxu0 0.0
        %347 = vmatpush1.msra.mxu0 0.0
        %348 = vmatprep.subr.mxu0 0.0
        %349 = vmatpush1.msra.mxu0 0.0
        %350 = vmatprep.subr.mxu0 0.0
        %351 = vmatpush1.msra.mxu0 0.0
        %352 = vmatprep.mubr.f32.mxu0 0.0
        %353 = vmatmul.mubr.f32.gmra.mrb[0].mxu0 %v283
        %v354 = vpop.f32.mrb[0].mxu0
        %v355 = vadd.f32 0.0, %v354
        %v356 = vpop.f32.mrb[0].mxu0
        %357 = vmatprep.mubr.f32.mxu0 0.0
        %358 = vmatmul.mubr.f32.gmra.mrb[0].mxu0 %v286
        %v359 = vpop.f32.mrb[0].mxu0
        %v360 = vadd.f32 0.0, %v359
        %v361 = vpop.f32.mrb[0].mxu0
        %362 = vdwg.mxu0
        %vm363 = vcmask 130048
        %364 = vst.msk [vmem:[%s203] sm:$0xff] %vm363, %v355
        %365 = vst.msk [vmem:[%s203 + $0x8] sm:$0xff] %vm363, %v360
        %s366 = sand.u32 %s112, 1
        %s367 = scalar_lea.sflag [#allocation4], %s366
        %s368 = sand.u32 %s112, 1
        %s369 = smul.addr %s368, 16
        %s370 = scalar_lea.vmem [#allocation5], %s369
        // Predicated region
        $region37: #{tpu_custom_call.1} parent=31 // pred_check
          %p371 = pneg %p122
        $region38: #{tpu_custom_call.1} parent=31 // pred_check_branch
          %373 = sbr.rel (%p371) target = $region40
        $region39: #{tpu_custom_call.1} parent=31 // pred_region
          %s375 = ssub.s32 256, 256
          %376 = vsyncadd %s367, %s375
          %s377 = smul.addr %s25, 2
          %s378 = smul.addr %s24, 8
          %s379 = sadd.s32 %s377, %s378
          %s380 = smul.addr %s379, 128
          %s381 = scalar_lea.hbm %s3, %s380
          %s382 = sshll.u32 %s370, 4
          %s383 = int_to_ptr.vmem [resolvable:$true] %s382
          %388 = dma.vmem_to_hbm [thread:$0]  %s383, 256, %s381, %s367, 128, 128, 8
        $region40: #{tpu_custom_call.1} parent=31 // pred_fallthru
          _
      $region32: #{tpu_custom_call.1} parent=5 // pred_fallthru
        _
      %p389 = scmp.le.s32.totalorder 2, %s15
      // Predicated region
      $region41: #{tpu_custom_call.1} parent=5 // pred_check
        %p390 = pneg %p389
      $region42: #{tpu_custom_call.1} parent=5 // pred_check_branch
        %392 = sbr.rel (%p390) target = $region44
      $region43: #{tpu_custom_call.1} parent=5 // pred_region
        %s393 = ssub.s32 %s15, 2
        // Predicated region
        $region45: #{tpu_custom_call.1} parent=43 // pred_check
          %p394 = pneg %p128
        $region46: #{tpu_custom_call.1} parent=43 // pred_check_branch
          %396 = sbr.rel (%p394) target = $region48
        $region47: #{tpu_custom_call.1} parent=43 // pred_region
          %s397 = sand.u32 %s113, 1
          %s398 = scalar_lea.sflag [#allocation4], %s397
          %s399 = sand.u32 %s113, 1
          %s400 = smul.addr %s399, 16
          %s401 = scalar_lea.vmem [#allocation5], %s400
          %402 = dma.done %s398, 256
        $region48: #{tpu_custom_call.1} parent=43 // pred_fallthru
          _
      $region44: #{tpu_custom_call.1} parent=5 // pred_fallthru
        _
    $region6: #{tpu_custom_call.1} parent=1 // loop_footer
      %s19 = sadd.s32 1, %s15
    $region7: #{tpu_custom_call.1} parent=1 // loop_footer_branch
      %14 = sbr.rel target = $region3
    $region8: #{tpu_custom_call.1} parent=1 // loop_exit
      _
    %403 = vsyncpa [#allocation3], 1
    %s404 = scalar_lea.sflag [#allocation3], 1
    %405 = vsyncpa %s404, 1
    %406 = vsyncpa [#allocation4], 1
    %s407 = scalar_lea.sflag [#allocation4], 1
    %408 = vsyncpa %s407, 1

</llo_original>
